<compile_context>
chip_gen: v6e
topology: v6e:2x2x1
jax: 0.10.0
libtpu: 0.0.40
codegen_flags: <defaults>
</compile_context>

<pallas_src>
import jax
import jax.numpy as jnp
from jax.experimental import pallas as pl
from jax.experimental.pallas import tpu as pltpu


def ddqn_fused_kernel(x_ref,
                      w1_ref, b1_ref,
                      w2_ref, b2_ref,
                      w3_ref, b3_ref,
                      w4_ref, b4_ref,
                      out_ref):
    x = x_ref[...]

    # fc1 + ReLU
    h = jnp.dot(x, w1_ref[...], preferred_element_type=jnp.float32) + b1_ref[...]
    h = jnp.maximum(h, 0.0)

    # fc2 + ReLU
    h = jnp.dot(h, w2_ref[...], preferred_element_type=jnp.float32) + b2_ref[...]
    h = jnp.maximum(h, 0.0)

    # fused fc3 = [fc3_1 | fc3_2] + ReLU   (single 64x64 matmul for both streams)
    h = jnp.dot(h, w3_ref[...], preferred_element_type=jnp.float32) + b3_ref[...]
    h = jnp.maximum(h, 0.0)

    # fused head: dueling combine (V + A - mean(A)) folded into W4/b4
    q = jnp.dot(h, w4_ref[...], preferred_element_type=jnp.float32) + b4_ref[...]
    out_ref[...] = q.astype(out_ref.dtype)


def fuse_params(params, num_actions):
    """Wrapper-side algebraic fusion of the dueling heads (pure JAX, one-time)."""
    (w1, b1, w2, b2, w31, b31, w41, b41, w32, b32, w42, b42) = params
    A = num_actions
    ones_row = jnp.ones((1, A), jnp.float32)
    # Centering matrix: A @ C == A - mean_A(A)
    C = jnp.eye(A, dtype=jnp.float32) - jnp.full((A, A), 1.0 / A, jnp.float32)

    w3 = jnp.concatenate([w31, w32], axis=1)                 # (64, 64)
    b3 = jnp.concatenate([b31, b32], axis=1)                 # (1, 64)
    w4 = jnp.concatenate([w41 @ ones_row, w42 @ C], axis=0)  # (64, A)
    b4 = b41 @ ones_row + b42 @ C                            # (1, A)
    return (w1, b1, w2, b2, w3, b3, w4, b4)


def ddqn_forward(state, fused_params, *, block_batch=256):
    """state: (B, state_size) f32; fused_params from fuse_params()."""
    B, S = state.shape
    (w1, b1, w2, b2, w3, b3, w4, b4) = fused_params
    A = w4.shape[-1]

    # Batch tile: whole batch if small, otherwise tile (weights stay resident).
    TB = B if B <= block_batch else block_batch
    grid = (pl.cdiv(B, TB),)

    vmem = pltpu.MemorySpace.VMEM

    def const_spec(arr):
        # Full-array block, constant index -> loaded once, resident across steps.
        return pl.BlockSpec(arr.shape, lambda i: (0, 0), memory_space=vmem)

    in_specs = [pl.BlockSpec((TB, S), lambda i: (i, 0), memory_space=vmem)]
    in_specs += [const_spec(a) for a in fused_params]
    out_specs = pl.BlockSpec((TB, A), lambda i: (i, 0), memory_space=vmem)

    return pl.pallas_call(
        ddqn_fused_kernel,
        out_shape=jax.ShapeDtypeStruct((B, A), jnp.float32),
        grid=grid,
        in_specs=in_specs,
        out_specs=out_specs,
        compiler_params=pltpu.CompilerParams(
            dimension_semantics=("parallel",),   # shards batch across v7x's 2 TCs
            vmem_limit_bytes=32 * 1024 * 1024,
        ),
    )(state, *fused_params)


def _linear_init(key, fan_in, fan_out):
    """Mimic torch.nn.Linear default init: U(-1/sqrt(fan_in), 1/sqrt(fan_in))."""
    kw, kb = jax.random.split(key)
    bound = 1.0 / jnp.sqrt(jnp.float32(fan_in))
    w = jax.random.uniform(kw, (fan_in, fan_out), jnp.float32, -bound, bound)
    b = jax.random.uniform(kb, (1, fan_out), jnp.float32, -bound, bound)
    return w, b


def make_params(key, state_size, action_size, fc1_size=64, fc2_size=64):
    fc3_1_size = fc3_2_size = 32
    keys = jax.random.split(key, 6)
    w1, b1 = _linear_init(keys[0], state_size, fc1_size)
    w2, b2 = _linear_init(keys[1], fc1_size, fc2_size)
    w31, b31 = _linear_init(keys[2], fc2_size, fc3_1_size)
    w41, b41 = _linear_init(keys[3], fc3_1_size, 1)
    w32, b32 = _linear_init(keys[4], fc2_size, fc3_2_size)
    w42, b42 = _linear_init(keys[5], fc3_2_size, action_size)
    return (w1, b1, w2, b2, w31, b31, w41, b41, w32, b32, w42, b42)


def ddqn_reference(state, params):
    """Unfused pure-JAX reference matching the original PyTorch forward."""
    (w1, b1, w2, b2, w31, b31, w41, b41, w32, b32, w42, b42) = params
    h = jnp.maximum(state @ w1 + b1, 0.0)
    h = jnp.maximum(h @ w2 + b2, 0.0)
    v = jnp.maximum(h @ w31 + b31, 0.0) @ w41 + b41
    a = jnp.maximum(h @ w32 + b32, 0.0) @ w42 + b42
    return v + a - jnp.mean(a, axis=1, keepdims=True)


if __name__ == "__main__":
    # LunarLander-v2: state_size=8, action_size=4
    batch, state_size, action_size = 8, 8, 4

    key = jax.random.PRNGKey(0)
    k_params, k_state = jax.random.split(key)
    params = make_params(k_params, state_size, action_size)
    fused = fuse_params(params, action_size)
    state = jax.random.normal(k_state, (batch, state_size), jnp.float32)

    out = ddqn_forward(state, fused)
    out = jax.block_until_ready(out)

    ref = ddqn_reference(state, params)
    assert out.shape == (batch, action_size)
    assert jnp.allclose(out, ref, atol=1e-5, rtol=1e-5)

    print("KERNEL_OK")
</pallas_src>

<mosaic_0001>
module attributes {stable_mosaic.version = 11 : i64} {
  func.func @ddqn_fused_kernel(%arg0: i32, %arg1: memref<8x8xf32, #tpu.memory_space<vmem>>, %arg2: memref<8x64xf32, #tpu.memory_space<vmem>>, %arg3: memref<1x64xf32, #tpu.memory_space<vmem>>, %arg4: memref<64x64xf32, #tpu.memory_space<vmem>>, %arg5: memref<1x64xf32, #tpu.memory_space<vmem>>, %arg6: memref<64x64xf32, #tpu.memory_space<vmem>>, %arg7: memref<1x64xf32, #tpu.memory_space<vmem>>, %arg8: memref<64x4xf32, #tpu.memory_space<vmem>>, %arg9: memref<1x4xf32, #tpu.memory_space<vmem>>, %arg10: memref<8x4xf32, #tpu.memory_space<vmem>>) attributes {dimension_semantics = [#tpu.dimension_semantics<parallel>], iteration_bounds = array<i64: 1>, scalar_prefetch = 0 : i64, scratch_operands = 0 : i64, tpu.core_type = #tpu.core_type<tc>, window_params = [{transform_indices = @transform_0, window_bounds = array<i64: 8, 8>}, {pipeline_mode = #tpu.pipeline_mode<synchronous>, transform_indices = @transform_1, window_bounds = array<i64: 8, 64>}, {pipeline_mode = #tpu.pipeline_mode<synchronous>, transform_indices = @transform_2, window_bounds = array<i64: 1, 64>}, {pipeline_mode = #tpu.pipeline_mode<synchronous>, transform_indices = @transform_3, window_bounds = array<i64: 64, 64>}, {pipeline_mode = #tpu.pipeline_mode<synchronous>, transform_indices = @transform_4, window_bounds = array<i64: 1, 64>}, {pipeline_mode = #tpu.pipeline_mode<synchronous>, transform_indices = @transform_5, window_bounds = array<i64: 64, 64>}, {pipeline_mode = #tpu.pipeline_mode<synchronous>, transform_indices = @transform_6, window_bounds = array<i64: 1, 64>}, {pipeline_mode = #tpu.pipeline_mode<synchronous>, transform_indices = @transform_7, window_bounds = array<i64: 64, 4>}, {pipeline_mode = #tpu.pipeline_mode<synchronous>, transform_indices = @transform_8, window_bounds = array<i64: 1, 4>}, {transform_indices = @transform_9, window_bounds = array<i64: 8, 4>}]} {
    %c0 = arith.constant 0 : index
    %c0_0 = arith.constant 0 : index
    %0 = vector.load %arg1[%c0, %c0_0] : memref<8x8xf32, #tpu.memory_space<vmem>>, vector<8x8xf32>
    %c0_1 = arith.constant 0 : index
    %c0_2 = arith.constant 0 : index
    %1 = vector.load %arg2[%c0_1, %c0_2] : memref<8x64xf32, #tpu.memory_space<vmem>>, vector<8x64xf32>
    %cst = arith.constant dense<0.000000e+00> : vector<8x64xf32>
    %2 = tpu.matmul %0, %1, %cst {dimension_numbers = #tpu.dot_dimension_numbers<[1], [0], [0], [1], [0, 0, 1, 1], [], []>} : vector<8x8xf32>, vector<8x64xf32>, vector<8x64xf32> -> vector<8x64xf32>
    %c0_3 = arith.constant 0 : index
    %c0_4 = arith.constant 0 : index
    %3 = vector.load %arg3[%c0_3, %c0_4] : memref<1x64xf32, #tpu.memory_space<vmem>>, vector<1x64xf32>
    %4 = vector.broadcast %3 : vector<1x64xf32> to vector<8x64xf32>
    %5 = arith.addf %2, %4 : vector<8x64xf32>
    %cst_5 = arith.constant 0.000000e+00 : f32
    %6 = vector.broadcast %cst_5 : f32 to vector<8x64xf32>
    %7 = arith.maximumf %5, %6 : vector<8x64xf32>
    %c0_6 = arith.constant 0 : index
    %c0_7 = arith.constant 0 : index
    %8 = vector.load %arg4[%c0_6, %c0_7] : memref<64x64xf32, #tpu.memory_space<vmem>>, vector<64x64xf32>
    %cst_8 = arith.constant dense<0.000000e+00> : vector<8x64xf32>
    %9 = tpu.matmul %7, %8, %cst_8 {dimension_numbers = #tpu.dot_dimension_numbers<[1], [0], [0], [1], [0, 0, 1, 1], [], []>} : vector<8x64xf32>, vector<64x64xf32>, vector<8x64xf32> -> vector<8x64xf32>
    %c0_9 = arith.constant 0 : index
    %c0_10 = arith.constant 0 : index
    %10 = vector.load %arg5[%c0_9, %c0_10] : memref<1x64xf32, #tpu.memory_space<vmem>>, vector<1x64xf32>
    %11 = vector.broadcast %10 : vector<1x64xf32> to vector<8x64xf32>
    %12 = arith.addf %9, %11 : vector<8x64xf32>
    %cst_11 = arith.constant 0.000000e+00 : f32
    %13 = vector.broadcast %cst_11 : f32 to vector<8x64xf32>
    %14 = arith.maximumf %12, %13 : vector<8x64xf32>
    %c0_12 = arith.constant 0 : index
    %c0_13 = arith.constant 0 : index
    %15 = vector.load %arg6[%c0_12, %c0_13] : memref<64x64xf32, #tpu.memory_space<vmem>>, vector<64x64xf32>
    %cst_14 = arith.constant dense<0.000000e+00> : vector<8x64xf32>
    %16 = tpu.matmul %14, %15, %cst_14 {dimension_numbers = #tpu.dot_dimension_numbers<[1], [0], [0], [1], [0, 0, 1, 1], [], []>} : vector<8x64xf32>, vector<64x64xf32>, vector<8x64xf32> -> vector<8x64xf32>
    %c0_15 = arith.constant 0 : index
    %c0_16 = arith.constant 0 : index
    %17 = vector.load %arg7[%c0_15, %c0_16] : memref<1x64xf32, #tpu.memory_space<vmem>>, vector<1x64xf32>
    %18 = vector.broadcast %17 : vector<1x64xf32> to vector<8x64xf32>
    %19 = arith.addf %16, %18 : vector<8x64xf32>
    %cst_17 = arith.constant 0.000000e+00 : f32
    %20 = vector.broadcast %cst_17 : f32 to vector<8x64xf32>
    %21 = arith.maximumf %19, %20 : vector<8x64xf32>
    %c0_18 = arith.constant 0 : index
    %c0_19 = arith.constant 0 : index
    %22 = vector.load %arg8[%c0_18, %c0_19] : memref<64x4xf32, #tpu.memory_space<vmem>>, vector<64x4xf32>
    %cst_20 = arith.constant dense<0.000000e+00> : vector<8x4xf32>
    %23 = tpu.matmul %21, %22, %cst_20 {dimension_numbers = #tpu.dot_dimension_numbers<[1], [0], [0], [1], [0, 0, 1, 1], [], []>} : vector<8x64xf32>, vector<64x4xf32>, vector<8x4xf32> -> vector<8x4xf32>
    %c0_21 = arith.constant 0 : index
    %c0_22 = arith.constant 0 : index
    %24 = vector.load %arg9[%c0_21, %c0_22] : memref<1x4xf32, #tpu.memory_space<vmem>>, vector<1x4xf32>
    %25 = vector.broadcast %24 : vector<1x4xf32> to vector<8x4xf32>
    %26 = arith.addf %23, %25 : vector<8x4xf32>
    %c0_23 = arith.constant 0 : index
    %c0_24 = arith.constant 0 : index
    %27 = vector.load %arg10[%c0_23, %c0_24] : memref<8x4xf32, #tpu.memory_space<vmem>>, vector<8x4xf32>
    tpu.vector_store %arg10[%c0_23, %c0_24], %26 {strides = array<i32>} : memref<8x4xf32, #tpu.memory_space<vmem>>, vector<8x4xf32>,
    return
  }
  func.func @transform_0(%arg0: i32) -> (i32, i32) {
    %c0_i32 = arith.constant 0 : i32
    %c0_i32_0 = arith.constant 0 : i32
    return %arg0, %c0_i32 : i32, i32
  }
  func.func @transform_1(%arg0: i32) -> (i32, i32) {
    %c0_i32 = arith.constant 0 : i32
    %c0_i32_0 = arith.constant 0 : i32
    %c0_i32_1 = arith.constant 0 : i32
    return %c0_i32, %c0_i32_0 : i32, i32
  }
  func.func @transform_2(%arg0: i32) -> (i32, i32) {
    %c0_i32 = arith.constant 0 : i32
    %c0_i32_0 = arith.constant 0 : i32
    %c0_i32_1 = arith.constant 0 : i32
    return %c0_i32, %c0_i32_0 : i32, i32
  }
  func.func @transform_3(%arg0: i32) -> (i32, i32) {
    %c0_i32 = arith.constant 0 : i32
    %c0_i32_0 = arith.constant 0 : i32
    %c0_i32_1 = arith.constant 0 : i32
    return %c0_i32, %c0_i32_0 : i32, i32
  }
  func.func @transform_4(%arg0: i32) -> (i32, i32) {
    %c0_i32 = arith.constant 0 : i32
    %c0_i32_0 = arith.constant 0 : i32
    %c0_i32_1 = arith.constant 0 : i32
    return %c0_i32, %c0_i32_0 : i32, i32
  }
  func.func @transform_5(%arg0: i32) -> (i32, i32) {
    %c0_i32 = arith.constant 0 : i32
    %c0_i32_0 = arith.constant 0 : i32
    %c0_i32_1 = arith.constant 0 : i32
    return %c0_i32, %c0_i32_0 : i32, i32
  }
  func.func @transform_6(%arg0: i32) -> (i32, i32) {
    %c0_i32 = arith.constant 0 : i32
    %c0_i32_0 = arith.constant 0 : i32
    %c0_i32_1 = arith.constant 0 : i32
    return %c0_i32, %c0_i32_0 : i32, i32
  }
  func.func @transform_7(%arg0: i32) -> (i32, i32) {
    %c0_i32 = arith.constant 0 : i32
    %c0_i32_0 = arith.constant 0 : i32
    %c0_i32_1 = arith.constant 0 : i32
    return %c0_i32, %c0_i32_0 : i32, i32
  }
  func.func @transform_8(%arg0: i32) -> (i32, i32) {
    %c0_i32 = arith.constant 0 : i32
    %c0_i32_0 = arith.constant 0 : i32
    %c0_i32_1 = arith.constant 0 : i32
    return %c0_i32, %c0_i32_0 : i32, i32
  }
  func.func @transform_9(%arg0: i32) -> (i32, i32) {
    %c0_i32 = arith.constant 0 : i32
    %c0_i32_0 = arith.constant 0 : i32
    return %arg0, %c0_i32 : i32, i32
  }
}

</mosaic_0001>

<llo_original>
// kernel: tpu_custom_call.1
$region0: #{tpu_custom_call.1}
  #allocation0 [shape = 'u32[]', space=smem, size = 0x4, offset = 0x4, fixed_abs, tag = 'smem constant byte address 0x4 - core index']
  #allocation1 [shape = 'u32[144,128]{1,0:T(1,128)}', space=vmem, size = 0x12000, scoped, tag = 'internal scratch']
  %s0 = inlined_call_operand.vmem [shape: f32[8,8], index: 0, kind: input, shape index: {}]
  %s1 = inlined_call_operand.hbm [shape: f32[8,64], index: 1, kind: input, shape index: {}]
  %s2 = inlined_call_operand.vmem [shape: f32[1,64], index: 2, kind: input, shape index: {}]
  %s3 = inlined_call_operand.vmem [shape: f32[64,64], index: 3, kind: input, shape index: {}]
  %s4 = inlined_call_operand.hbm [shape: f32[1,64], index: 4, kind: input, shape index: {}]
  %s5 = inlined_call_operand.hbm [shape: f32[64,64], index: 5, kind: input, shape index: {}]
  %s6 = inlined_call_operand.vmem [shape: f32[1,64], index: 6, kind: input, shape index: {}]
  %s7 = inlined_call_operand.vmem [shape: f32[64,4], index: 7, kind: input, shape index: {}]
  %s8 = inlined_call_operand.vmem [shape: f32[1,4], index: 8, kind: input, shape index: {}]
  %s9 = inlined_call_operand.vmem [shape: f32[8,4], index: 9, kind: output, shape index: {}]
  %s10 = sld [smem:[#allocation0]]
  $region58: #{tpu_custom_call.1} parent=0
    _
  %s12 = ssub.s32 1, %s10
  %s13 = scalar_select 0, %s12, %s10
  $region1: #{tpu_custom_call.1} parent=0
    #allocation2 [shape = 'u8[4096]{0}', space=vmem, size = 0x1000, scoped, tag = 'input window, operand 1, single buffered']
    #allocation3 [shape = 's32[1]{0}', space=sflag, size = 0x4, scoped, tag = 'scoped memory for tpu_custom_call.1']
    #allocation4 [shape = 'u8[512]{0}', space=vmem, size = 0x400, scoped, tag = 'input window, operand 4, single buffered']
    #allocation5 [shape = 's32[1]{0}', space=sflag, size = 0x4, scoped, tag = 'scoped memory for tpu_custom_call.1']
    #allocation6 [shape = 'u8[32768]{0}', space=vmem, size = 0x8000, scoped, tag = 'input window, operand 5, single buffered']
    %14 = vsyncpa [#allocation3], 0
    %15 = vsyncpa [#allocation5], 0
    // Predicated region
    $region2: #{tpu_custom_call.1} parent=1 // pred_check
      _
    $region3: #{tpu_custom_call.1} parent=1 // pred_check_branch
      %17 = sbr.rel (0) target = $region5
    $region4: #{tpu_custom_call.1} parent=1 // pred_region
      _
    $region5: #{tpu_custom_call.1} parent=1 // pred_fallthru
      _
    // Predicated region
    $region6: #{tpu_custom_call.1} parent=1 // pred_check
      _
    $region7: #{tpu_custom_call.1} parent=1 // pred_check_branch
      %19 = sbr.rel (0) target = $region9
    $region8: #{tpu_custom_call.1} parent=1 // pred_region
      %s21 = ssub.s32 128, 128
      %22 = vsyncadd [#allocation3], %s21
      %s24 = sshll.u32 [#allocation2], 4
      %s25 = int_to_ptr.vmem [resolvable:$true] %s24
      %27 = dma.hbm_to_vmem [thread:$0]  %s1, 128, %s25, [#allocation3]
    $region9: #{tpu_custom_call.1} parent=1 // pred_fallthru
      _
    // Predicated region
    $region10: #{tpu_custom_call.1} parent=1 // pred_check
      _
    $region11: #{tpu_custom_call.1} parent=1 // pred_check_branch
      %29 = sbr.rel (0) target = $region13
    $region12: #{tpu_custom_call.1} parent=1 // pred_region
      _
    $region13: #{tpu_custom_call.1} parent=1 // pred_fallthru
      _
    // Predicated region
    $region14: #{tpu_custom_call.1} parent=1 // pred_check
      _
    $region15: #{tpu_custom_call.1} parent=1 // pred_check_branch
      %31 = sbr.rel (0) target = $region17
    $region16: #{tpu_custom_call.1} parent=1 // pred_region
      _
    $region17: #{tpu_custom_call.1} parent=1 // pred_fallthru
      _
    // Predicated region
    $region18: #{tpu_custom_call.1} parent=1 // pred_check
      _
    $region19: #{tpu_custom_call.1} parent=1 // pred_check_branch
      %33 = sbr.rel (0) target = $region21
    $region20: #{tpu_custom_call.1} parent=1 // pred_region
      %s35 = ssub.s32 16, 16
      %36 = vsyncadd [#allocation5], %s35
      %s38 = sshll.u32 [#allocation4], 4
      %s39 = int_to_ptr.vmem [resolvable:$true] %s38
      %41 = dma.hbm_to_vmem [thread:$0]  %s4, 16, %s39, [#allocation5]
    $region21: #{tpu_custom_call.1} parent=1 // pred_fallthru
      _
    // Predicated region
    $region22: #{tpu_custom_call.1} parent=1 // pred_check
      _
    $region23: #{tpu_custom_call.1} parent=1 // pred_check_branch
      %43 = sbr.rel (0) target = $region25
    $region24: #{tpu_custom_call.1} parent=1 // pred_region
      %s45 = ssub.s32 1024, 1024
      %46 = vsyncadd [#allocation5], %s45
      %s47 = sshll.u32 [#allocation6], 4
      %s48 = int_to_ptr.vmem [resolvable:$true] %s47
      %53 = dma.hbm_to_vmem [thread:$0]  %s5, 1024, %s48, [#allocation5], 128, 128, 8
    $region25: #{tpu_custom_call.1} parent=1 // pred_fallthru
      _
    // Predicated region
    $region26: #{tpu_custom_call.1} parent=1 // pred_check
      _
    $region27: #{tpu_custom_call.1} parent=1 // pred_check_branch
      %55 = sbr.rel (0) target = $region29
    $region28: #{tpu_custom_call.1} parent=1 // pred_region
      _
    $region29: #{tpu_custom_call.1} parent=1 // pred_fallthru
      _
    // Predicated region
    $region30: #{tpu_custom_call.1} parent=1 // pred_check
      _
    $region31: #{tpu_custom_call.1} parent=1 // pred_check_branch
      %57 = sbr.rel (0) target = $region33
    $region32: #{tpu_custom_call.1} parent=1 // pred_region
      _
    $region33: #{tpu_custom_call.1} parent=1 // pred_fallthru
      _
    // Predicated region
    $region34: #{tpu_custom_call.1} parent=1 // pred_check
      _
    $region35: #{tpu_custom_call.1} parent=1 // pred_check_branch
      %59 = sbr.rel (0) target = $region37
    $region36: #{tpu_custom_call.1} parent=1 // pred_region
      _
    $region37: #{tpu_custom_call.1} parent=1 // pred_fallthru
      _
    // Predicated region
    $region38: #{tpu_custom_call.1} parent=1 // pred_check
      _
    $region39: #{tpu_custom_call.1} parent=1 // pred_check_branch
      %61 = sbr.rel (0) target = $region41
    $region40: #{tpu_custom_call.1} parent=1 // pred_region
      %62 = dma.done [#allocation3], 128
    $region41: #{tpu_custom_call.1} parent=1 // pred_fallthru
      _
    // Predicated region
    $region42: #{tpu_custom_call.1} parent=1 // pred_check
      _
    $region43: #{tpu_custom_call.1} parent=1 // pred_check_branch
      %64 = sbr.rel (0) target = $region45
    $region44: #{tpu_custom_call.1} parent=1 // pred_region
      %65 = dma.done [#allocation5], 16
    $region45: #{tpu_custom_call.1} parent=1 // pred_fallthru
      _
    // Predicated region
    $region46: #{tpu_custom_call.1} parent=1 // pred_check
      _
    $region47: #{tpu_custom_call.1} parent=1 // pred_check_branch
      %67 = sbr.rel (0) target = $region49
    $region48: #{tpu_custom_call.1} parent=1 // pred_region
      %68 = dma.done [#allocation5], 1024
    $region49: #{tpu_custom_call.1} parent=1 // pred_fallthru
      _
    %v69 = vld [vmem:[%s0] sm:$0xff]
    %v70 = vld [vmem:[#allocation2] sm:$0xff]
    %v71 = vld [vmem:[%s2] sm:$0x1]
    %v73 = vlaneseq
    %v74 = vshrl.u32 %v73, 7
    %v75 = vsub.s32 0, %v74
    %v76 = vrot.slane %v71, %v75
    %vm78 = vcmask 64512
    %v80 = vsel %vm78, %v69, 0
    %82 = vmatprep.subr.mxu0 0.0
    %83 = vmatpush1.msra.mxu0 0.0
    %84 = vmatprep.subr.mxu0 0.0
    %85 = vmatpush1.msra.mxu0 0.0
    %86 = vmatprep.subr.mxu0 0.0
    %87 = vmatpush1.msra.mxu0 0.0
    %88 = vmatprep.subr.mxu0 0.0
    %89 = vmatpush1.msra.mxu0 0.0
    %90 = vmatprep.subr.mxu0 0.0
    %91 = vmatpush1.msra.mxu0 0.0
    %92 = vmatprep.subr.mxu0 0.0
    %93 = vmatpush1.msra.mxu0 0.0
    %94 = vmatprep.subr.mxu0 0.0
    %95 = vmatpush1.msra.mxu0 0.0
    %96 = vmatprep.subr.mxu0 0.0
    %97 = vmatpush1.msra.mxu0 0.0
    %98 = vmatprep.subr.mxu0 0.0
    %99 = vmatpush1.msra.mxu0 0.0
    %100 = vmatprep.subr.mxu0 0.0
    %101 = vmatpush1.msra.mxu0 0.0
    %102 = vmatprep.subr.mxu0 0.0
    %103 = vmatpush1.msra.mxu0 0.0
    %104 = vmatprep.subr.mxu0 0.0
    %105 = vmatpush1.msra.mxu0 0.0
    %106 = vmatprep.subr.mxu0 0.0
    %107 = vmatpush1.msra.mxu0 0.0
    %108 = vmatprep.subr.mxu0 0.0
    %109 = vmatpush1.msra.mxu0 0.0
    %110 = vmatprep.subr.mxu0 0.0
    %111 = vmatpush1.msra.mxu0 0.0
    %112 = vmatprep.subr.mxu0 0.0
    %113 = vmatpush1.msra.mxu0 %v70
    %114 = vmatprep.subr.mxu0 0.0
    %115 = vmatpush2.msra.mxu0 0.0
    %116 = vmatprep.subr.mxu0 0.0
    %117 = vmatpush2.msra.mxu0 0.0
    %118 = vmatprep.subr.mxu0 0.0
    %119 = vmatpush2.msra.mxu0 0.0
    %120 = vmatprep.subr.mxu0 0.0
    %121 = vmatpush2.msra.mxu0 0.0
    %122 = vmatprep.subr.mxu0 0.0
    %123 = vmatpush2.msra.mxu0 0.0
    %124 = vmatprep.subr.mxu0 0.0
    %125 = vmatpush2.msra.mxu0 0.0
    %126 = vmatprep.subr.mxu0 0.0
    %127 = vmatpush2.msra.mxu0 0.0
    %128 = vmatprep.subr.mxu0 0.0
    %129 = vmatpush2.msra.mxu0 0.0
    %130 = vmatprep.subr.mxu0 0.0
    %131 = vmatpush2.msra.mxu0 0.0
    %132 = vmatprep.subr.mxu0 0.0
    %133 = vmatpush2.msra.mxu0 0.0
    %134 = vmatprep.subr.mxu0 0.0
    %135 = vmatpush2.msra.mxu0 0.0
    %136 = vmatprep.subr.mxu0 0.0
    %137 = vmatpush2.msra.mxu0 0.0
    %138 = vmatprep.subr.mxu0 0.0
    %139 = vmatpush2.msra.mxu0 0.0
    %140 = vmatprep.subr.mxu0 0.0
    %141 = vmatpush2.msra.mxu0 0.0
    %142 = vmatprep.subr.mxu0 0.0
    %143 = vmatpush2.msra.mxu0 0.0
    %144 = vmatprep.subr.mxu0 0.0
    %145 = vmatpush2.msra.mxu0 0.0
    %146 = vmatprep.mubr.f32.mxu0 0.0
    %147 = vmatmul.mubr.f32.gmra.mxu0 %v80
    %v148 = vpop.f32.mrf.mxu0
    %v149 = vadd.f32 %v76, %v148
    %v150 = vpop.f32.mrf.mxu0
    %151 = vdwg.mxu0
    %v152 = vmax.f32 %v149, 0.0
    %v153 = vld [vmem:[%s3] sm:$0xff]
    %v154 = vld [vmem:[%s3 + $0x8] sm:$0xff]
    %v155 = vld [vmem:[%s3 + $0x10] sm:$0xff]
    %v156 = vld [vmem:[%s3 + $0x18] sm:$0xff]
    %v157 = vld [vmem:[%s3 + $0x20] sm:$0xff]
    %v158 = vld [vmem:[%s3 + $0x28] sm:$0xff]
    %v159 = vld [vmem:[%s3 + $0x30] sm:$0xff]
    %v160 = vld [vmem:[%s3 + $0x38] sm:$0xff]
    %v161 = vld [vmem:[#allocation4] sm:$0x1]
    %v163 = vlaneseq
    %v164 = vshrl.u32 %v163, 7
    %v165 = vsub.s32 0, %v164
    %v166 = vrot.slane %v161, %v165
    %vm168 = vcmask 523264
    %v170 = vsel %vm168, %v152, 0
    %172 = vmatprep.subr.mxu0 0.0
    %173 = vmatpush1.msra.mxu0 0.0
    %174 = vmatprep.subr.mxu0 0.0
    %175 = vmatpush1.msra.mxu0 0.0
    %176 = vmatprep.subr.mxu0 0.0
    %177 = vmatpush1.msra.mxu0 0.0
    %178 = vmatprep.subr.mxu0 0.0
    %179 = vmatpush1.msra.mxu0 0.0
    %180 = vmatprep.subr.mxu0 0.0
    %181 = vmatpush1.msra.mxu0 0.0
    %182 = vmatprep.subr.mxu0 0.0
    %183 = vmatpush1.msra.mxu0 0.0
    %184 = vmatprep.subr.mxu0 0.0
    %185 = vmatpush1.msra.mxu0 0.0
    %186 = vmatprep.subr.mxu0 0.0
    %187 = vmatpush1.msra.mxu0 0.0
    %188 = vmatprep.subr.mxu0 0.0
    %189 = vmatpush1.msra.mxu0 %v160
    %190 = vmatprep.subr.mxu0 0.0
    %191 = vmatpush1.msra.mxu0 %v159
    %192 = vmatprep.subr.mxu0 0.0
    %193 = vmatpush1.msra.mxu0 %v158
    %194 = vmatprep.subr.mxu0 0.0
    %195 = vmatpush1.msra.mxu0 %v157
    %196 = vmatprep.subr.mxu0 0.0
    %197 = vmatpush1.msra.mxu0 %v156
    %198 = vmatprep.subr.mxu0 0.0
    %199 = vmatpush1.msra.mxu0 %v155
    %200 = vmatprep.subr.mxu0 0.0
    %201 = vmatpush1.msra.mxu0 %v154
    %202 = vmatprep.subr.mxu0 0.0
    %203 = vmatpush1.msra.mxu0 %v153
    %204 = vmatprep.subr.mxu0 0.0
    %205 = vmatpush2.msra.mxu0 0.0
    %206 = vmatprep.subr.mxu0 0.0
    %207 = vmatpush2.msra.mxu0 0.0
    %208 = vmatprep.subr.mxu0 0.0
    %209 = vmatpush2.msra.mxu0 0.0
    %210 = vmatprep.subr.mxu0 0.0
    %211 = vmatpush2.msra.mxu0 0.0
    %212 = vmatprep.subr.mxu0 0.0
    %213 = vmatpush2.msra.mxu0 0.0
    %214 = vmatprep.subr.mxu0 0.0
    %215 = vmatpush2.msra.mxu0 0.0
    %216 = vmatprep.subr.mxu0 0.0
    %217 = vmatpush2.msra.mxu0 0.0
    %218 = vmatprep.subr.mxu0 0.0
    %219 = vmatpush2.msra.mxu0 0.0
    %220 = vmatprep.subr.mxu0 0.0
    %221 = vmatpush2.msra.mxu0 0.0
    %222 = vmatprep.subr.mxu0 0.0
    %223 = vmatpush2.msra.mxu0 0.0
    %224 = vmatprep.subr.mxu0 0.0
    %225 = vmatpush2.msra.mxu0 0.0
    %226 = vmatprep.subr.mxu0 0.0
    %227 = vmatpush2.msra.mxu0 0.0
    %228 = vmatprep.subr.mxu0 0.0
    %229 = vmatpush2.msra.mxu0 0.0
    %230 = vmatprep.subr.mxu0 0.0
    %231 = vmatpush2.msra.mxu0 0.0
    %232 = vmatprep.subr.mxu0 0.0
    %233 = vmatpush2.msra.mxu0 0.0
    %234 = vmatprep.subr.mxu0 0.0
    %235 = vmatpush2.msra.mxu0 0.0
    %236 = vmatprep.mubr.f32.mxu0 0.0
    %237 = vmatmul.mubr.f32.gmra.mxu0 %v170
    %v238 = vpop.f32.mrf.mxu0
    %v239 = vadd.f32 %v166, %v238
    %v240 = vpop.f32.mrf.mxu0
    %241 = vdwg.mxu0
    %v242 = vmax.f32 %v239, 0.0
    %v243 = vld [vmem:[#allocation6] sm:$0xff]
    %v244 = vld [vmem:[#allocation6 + $0x8] sm:$0xff]
    %v245 = vld [vmem:[#allocation6 + $0x10] sm:$0xff]
    %v246 = vld [vmem:[#allocation6 + $0x18] sm:$0xff]
    %v247 = vld [vmem:[#allocation6 + $0x20] sm:$0xff]
    %v248 = vld [vmem:[#allocation6 + $0x28] sm:$0xff]
    %v249 = vld [vmem:[#allocation6 + $0x30] sm:$0xff]
    %v250 = vld [vmem:[#allocation6 + $0x38] sm:$0xff]
    %v251 = vld [vmem:[%s6] sm:$0x1]
    %v253 = vlaneseq
    %v254 = vshrl.u32 %v253, 7
    %v255 = vsub.s32 0, %v254
    %v256 = vrot.slane %v251, %v255
    %v259 = vsel %vm168, %v242, 0
    %261 = vmatprep.subr.mxu0 0.0
    %262 = vmatpush1.msra.mxu0 0.0
    %263 = vmatprep.subr.mxu0 0.0
    %264 = vmatpush1.msra.mxu0 0.0
    %265 = vmatprep.subr.mxu0 0.0
    %266 = vmatpush1.msra.mxu0 0.0
    %267 = vmatprep.subr.mxu0 0.0
    %268 = vmatpush1.msra.mxu0 0.0
    %269 = vmatprep.subr.mxu0 0.0
    %270 = vmatpush1.msra.mxu0 0.0
    %271 = vmatprep.subr.mxu0 0.0
    %272 = vmatpush1.msra.mxu0 0.0
    %273 = vmatprep.subr.mxu0 0.0
    %274 = vmatpush1.msra.mxu0 0.0
    %275 = vmatprep.subr.mxu0 0.0
    %276 = vmatpush1.msra.mxu0 0.0
    %277 = vmatprep.subr.mxu0 0.0
    %278 = vmatpush1.msra.mxu0 %v250
    %279 = vmatprep.subr.mxu0 0.0
    %280 = vmatpush1.msra.mxu0 %v249
    %281 = vmatprep.subr.mxu0 0.0
    %282 = vmatpush1.msra.mxu0 %v248
    %283 = vmatprep.subr.mxu0 0.0
    %284 = vmatpush1.msra.mxu0 %v247
    %285 = vmatprep.subr.mxu0 0.0
    %286 = vmatpush1.msra.mxu0 %v246
    %287 = vmatprep.subr.mxu0 0.0
    %288 = vmatpush1.msra.mxu0 %v245
    %289 = vmatprep.subr.mxu0 0.0
    %290 = vmatpush1.msra.mxu0 %v244
    %291 = vmatprep.subr.mxu0 0.0
    %292 = vmatpush1.msra.mxu0 %v243
    %293 = vmatprep.subr.mxu0 0.0
    %294 = vmatpush2.msra.mxu0 0.0
    %295 = vmatprep.subr.mxu0 0.0
    %296 = vmatpush2.msra.mxu0 0.0
    %297 = vmatprep.subr.mxu0 0.0
    %298 = vmatpush2.msra.mxu0 0.0
    %299 = vmatprep.subr.mxu0 0.0
    %300 = vmatpush2.msra.mxu0 0.0
    %301 = vmatprep.subr.mxu0 0.0
    %302 = vmatpush2.msra.mxu0 0.0
    %303 = vmatprep.subr.mxu0 0.0
    %304 = vmatpush2.msra.mxu0 0.0
    %305 = vmatprep.subr.mxu0 0.0
    %306 = vmatpush2.msra.mxu0 0.0
    %307 = vmatprep.subr.mxu0 0.0
    %308 = vmatpush2.msra.mxu0 0.0
    %309 = vmatprep.subr.mxu0 0.0
    %310 = vmatpush2.msra.mxu0 0.0
    %311 = vmatprep.subr.mxu0 0.0
    %312 = vmatpush2.msra.mxu0 0.0
    %313 = vmatprep.subr.mxu0 0.0
    %314 = vmatpush2.msra.mxu0 0.0
    %315 = vmatprep.subr.mxu0 0.0
    %316 = vmatpush2.msra.mxu0 0.0
    %317 = vmatprep.subr.mxu0 0.0
    %318 = vmatpush2.msra.mxu0 0.0
    %319 = vmatprep.subr.mxu0 0.0
    %320 = vmatpush2.msra.mxu0 0.0
    %321 = vmatprep.subr.mxu0 0.0
    %322 = vmatpush2.msra.mxu0 0.0
    %323 = vmatprep.subr.mxu0 0.0
    %324 = vmatpush2.msra.mxu0 0.0
    %325 = vmatprep.mubr.f32.mxu0 0.0
    %326 = vmatmul.mubr.f32.gmra.mxu0 %v259
    %v327 = vpop.f32.mrf.mxu0
    %v328 = vadd.f32 %v256, %v327
    %v329 = vpop.f32.mrf.mxu0
    %330 = vdwg.mxu0
    %v331 = vmax.f32 %v328, 0.0
    %v332 = vld [vmem:[%s7] sm:$0xff]
    %v333 = vld [vmem:[%s7 + $0x8] sm:$0xff]
    %v334 = vld [vmem:[%s7 + $0x10] sm:$0xff]
    %v335 = vld [vmem:[%s7 + $0x18] sm:$0xff]
    %v336 = vld [vmem:[%s7 + $0x20] sm:$0xff]
    %v337 = vld [vmem:[%s7 + $0x28] sm:$0xff]
    %v338 = vld [vmem:[%s7 + $0x30] sm:$0xff]
    %v339 = vld [vmem:[%s7 + $0x38] sm:$0xff]
    %v340 = vld [vmem:[%s8] sm:$0x1]
    %v342 = vlaneseq
    %v343 = vshrl.u32 %v342, 7
    %v344 = vsub.s32 0, %v343
    %v345 = vrot.slane %v340, %v344
    %v348 = vsel %vm168, %v331, 0
    %350 = vmatprep.subr.mxu0 0.0
    %351 = vmatpush1.msra.mxu0 0.0
    %352 = vmatprep.subr.mxu0 0.0
    %353 = vmatpush1.msra.mxu0 0.0
    %354 = vmatprep.subr.mxu0 0.0
    %355 = vmatpush1.msra.mxu0 0.0
    %356 = vmatprep.subr.mxu0 0.0
    %357 = vmatpush1.msra.mxu0 0.0
    %358 = vmatprep.subr.mxu0 0.0
    %359 = vmatpush1.msra.mxu0 0.0
    %360 = vmatprep.subr.mxu0 0.0
    %361 = vmatpush1.msra.mxu0 0.0
    %362 = vmatprep.subr.mxu0 0.0
    %363 = vmatpush1.msra.mxu0 0.0
    %364 = vmatprep.subr.mxu0 0.0
    %365 = vmatpush1.msra.mxu0 0.0
    %366 = vmatprep.subr.mxu0 0.0
    %367 = vmatpush1.msra.mxu0 %v339
    %368 = vmatprep.subr.mxu0 0.0
    %369 = vmatpush1.msra.mxu0 %v338
    %370 = vmatprep.subr.mxu0 0.0
    %371 = vmatpush1.msra.mxu0 %v337
    %372 = vmatprep.subr.mxu0 0.0
    %373 = vmatpush1.msra.mxu0 %v336
    %374 = vmatprep.subr.mxu0 0.0
    %375 = vmatpush1.msra.mxu0 %v335
    %376 = vmatprep.subr.mxu0 0.0
    %377 = vmatpush1.msra.mxu0 %v334
    %378 = vmatprep.subr.mxu0 0.0
    %379 = vmatpush1.msra.mxu0 %v333
    %380 = vmatprep.subr.mxu0 0.0
    %381 = vmatpush1.msra.mxu0 %v332
    %382 = vmatprep.subr.mxu0 0.0
    %383 = vmatpush2.msra.mxu0 0.0
    %384 = vmatprep.subr.mxu0 0.0
    %385 = vmatpush2.msra.mxu0 0.0
    %386 = vmatprep.subr.mxu0 0.0
    %387 = vmatpush2.msra.mxu0 0.0
    %388 = vmatprep.subr.mxu0 0.0
    %389 = vmatpush2.msra.mxu0 0.0
    %390 = vmatprep.subr.mxu0 0.0
    %391 = vmatpush2.msra.mxu0 0.0
    %392 = vmatprep.subr.mxu0 0.0
    %393 = vmatpush2.msra.mxu0 0.0
    %394 = vmatprep.subr.mxu0 0.0
    %395 = vmatpush2.msra.mxu0 0.0
    %396 = vmatprep.subr.mxu0 0.0
    %397 = vmatpush2.msra.mxu0 0.0
    %398 = vmatprep.subr.mxu0 0.0
    %399 = vmatpush2.msra.mxu0 0.0
    %400 = vmatprep.subr.mxu0 0.0
    %401 = vmatpush2.msra.mxu0 0.0
    %402 = vmatprep.subr.mxu0 0.0
    %403 = vmatpush2.msra.mxu0 0.0
    %404 = vmatprep.subr.mxu0 0.0
    %405 = vmatpush2.msra.mxu0 0.0
    %406 = vmatprep.subr.mxu0 0.0
    %407 = vmatpush2.msra.mxu0 0.0
    %408 = vmatprep.subr.mxu0 0.0
    %409 = vmatpush2.msra.mxu0 0.0
    %410 = vmatprep.subr.mxu0 0.0
    %411 = vmatpush2.msra.mxu0 0.0
    %412 = vmatprep.subr.mxu0 0.0
    %413 = vmatpush2.msra.mxu0 0.0
    %414 = vmatprep.mubr.f32.mxu0 0.0
    %415 = vmatmul.mubr.f32.gmra.mxu0 %v348
    %v416 = vpop.f32.mrf.mxu0
    %v417 = vadd.f32 %v345, %v416
    %v418 = vpop.f32.mrf.mxu0
    %419 = vdwg.mxu0
    %vm420 = vcmask 31744
    %421 = vst.msk [vmem:[%s9] sm:$0xff] %vm420, %v417
    // Predicated region
    $region50: #{tpu_custom_call.1} parent=1 // pred_check
      _
    $region51: #{tpu_custom_call.1} parent=1 // pred_check_branch
      %423 = sbr.rel (0) target = $region53
    $region52: #{tpu_custom_call.1} parent=1 // pred_region
      _
    $region53: #{tpu_custom_call.1} parent=1 // pred_fallthru
      _
    // Predicated region
    $region54: #{tpu_custom_call.1} parent=1 // pred_check
      _
    $region55: #{tpu_custom_call.1} parent=1 // pred_check_branch
      %425 = sbr.rel (0) target = $region57
    $region56: #{tpu_custom_call.1} parent=1 // pred_region
      _
    $region57: #{tpu_custom_call.1} parent=1 // pred_fallthru
      _
    %426 = vsyncpa [#allocation3], 1
    %427 = vsyncpa [#allocation5], 1

</llo_original>
